<compile_context>
chip_gen: v7x
topology: tpu7x:2x2x1
jax: 0.10.0
libtpu: 0.0.40
codegen_flags: <defaults>
</compile_context>

<pallas_src>
import jax
import jax.numpy as jnp
from jax.experimental import pallas as pl
from jax.experimental.pallas import tpu as pltpu

_BN_EPS = 1e-5
_INV_SQRT2 = 0.7071067811865476
_LANE = 128


def _round_up(x, m):
    return (x + m - 1) // m * m


def _mlp_regressor_kernel(x_ref, w1_ref, b1_ref, w2_ref, b2_ref, o_ref):
    """One batch tile: out = GELU(x @ W1 + b1) @ W2' + b2' (BN folded into W2'/b2')."""
    x = x_ref[...]                                          # [TB, D_in]    (bf16, cast on host)
    w1 = w1_ref[...]                                        # [D_in, H]     (bf16)
    w2 = w2_ref[...]                                        # [H, D_out_p]  (f32, BN-folded)

    # fc1 on the MXU (bf16 inputs, f32 accumulation) + bias (f32)
    h = jnp.dot(x, w1, preferred_element_type=jnp.float32) + b1_ref[...]

    # GELU (exact erf variant, matches nn.GELU() default) — kept in f32.
    h = 0.5 * h * (1.0 + jax.lax.erf(h * _INV_SQRT2))

    # drop1 / BatchNorm1d / drop2: dropout is identity in eval mode,
    # BN (running stats + affine) is folded into W2'/b2' on the host.

    # fc2 on the MXU, fully f32 (negligible cost at K=256, N=128), + folded bias
    out = jnp.dot(h, w2, preferred_element_type=jnp.float32) + b2_ref[...]

    o_ref[...] = out.astype(o_ref.dtype)


def _pick_batch_tile(batch, cap):
    """Batch tile: multiple of 8, <= cap, and >=2 grid steps whenever batch > 8
    so the 'parallel' axis can engage both TensorCores on v7x."""
    if batch <= 8:
        return 8
    half = _round_up((batch + 1) // 2, 8)   # ceil(B/2), rounded to sublane multiple
    return min(_round_up(cap, 8), half)


def mlp_regressor_forward(x, params, *, block_b=1024):
    """Fused eval-mode forward of MLPRegressor via a single batch-tiled pallas_call."""
    w1, b1, gamma, beta, mean, var, w2, b2 = params
    B, d_in = x.shape
    H = w1.shape[1]
    d_out = w2.shape[1]

    # ---- host-side BN fold (eval-mode, mathematically exact) ----
    scale = gamma * jax.lax.rsqrt(var + _BN_EPS)            # [1, H]
    shift = beta - mean * scale                             # [1, H]
    w2_f = w2 * scale.reshape(H, 1)                         # diag(scale) @ W2  (kept f32)
    b2_f = b2 + shift @ w2                                  # [1, D_out]

    # ---- pad output columns to a multiple of 128 for lane-dense stores ----
    d_out_p = _round_up(d_out, _LANE)
    w2_f = jnp.pad(w2_f, ((0, 0), (0, d_out_p - d_out)))
    b2_f = jnp.pad(b2_f, ((0, 0), (0, d_out_p - d_out)))

    # ---- batch tiling ----
    tb = _pick_batch_tile(B, block_b)
    b_p = _round_up(B, tb)
    if b_p != B:
        x = jnp.pad(x, ((0, b_p - B), (0, 0)))

    # Matmul (fc1) inputs in bf16 on the host: halves x DMA bytes, no in-kernel cast.
    x_mx = x.astype(jnp.bfloat16)
    w1_mx = w1.astype(jnp.bfloat16)

    out = pl.pallas_call(
        _mlp_regressor_kernel,
        out_shape=jax.ShapeDtypeStruct((b_p, d_out_p), jnp.float32),
        grid=(b_p // tb,),
        in_specs=[
            pl.BlockSpec((tb, d_in), lambda i: (i, 0)),      # x: tiled over batch (bf16)
            pl.BlockSpec((d_in, H), lambda i: (0, 0)),       # W1: resident in VMEM (bf16)
            pl.BlockSpec((1, H), lambda i: (0, 0)),          # b1: resident (f32)
            pl.BlockSpec((H, d_out_p), lambda i: (0, 0)),    # W2' (BN-folded): resident (f32)
            pl.BlockSpec((1, d_out_p), lambda i: (0, 0)),    # b2' (BN-folded): resident (f32)
        ],
        out_specs=pl.BlockSpec((tb, d_out_p), lambda i: (i, 0)),
        compiler_params=pltpu.CompilerParams(
            dimension_semantics=("parallel",),               # batch axis -> both TCs on v7x
            vmem_limit_bytes=32 * 1024 * 1024,
        ),
    )(x_mx, w1_mx, b1, w2_f, b2_f)

    return out[:B, :d_out]


def init_params(key, input_shape, hidden_size, output_shape):
    """Deterministic init mimicking PyTorch nn.Linear / nn.BatchNorm1d defaults."""
    k1, k2, k3, k4 = jax.random.split(key, 4)

    bound1 = 1.0 / jnp.sqrt(input_shape)
    w1 = jax.random.uniform(k1, (input_shape, hidden_size), jnp.float32,
                            minval=-bound1, maxval=bound1)
    b1 = jax.random.uniform(k2, (1, hidden_size), jnp.float32,
                            minval=-bound1, maxval=bound1)

    gamma = jnp.ones((1, hidden_size), jnp.float32)
    beta = jnp.zeros((1, hidden_size), jnp.float32)
    running_mean = jnp.zeros((1, hidden_size), jnp.float32)
    running_var = jnp.ones((1, hidden_size), jnp.float32)

    bound2 = 1.0 / jnp.sqrt(hidden_size)
    w2 = jax.random.uniform(k3, (hidden_size, output_shape), jnp.float32,
                            minval=-bound2, maxval=bound2)
    b2 = jax.random.uniform(k4, (1, output_shape), jnp.float32,
                            minval=-bound2, maxval=bound2)

    return (w1, b1, gamma, beta, running_mean, running_var, w2, b2)


def _reference_forward(x, params):
    """Pure-JAX f32 reference (un-folded BN) for correctness check."""
    w1, b1, gamma, beta, mean, var, w2, b2 = params
    h = x @ w1 + b1
    h = 0.5 * h * (1.0 + jax.lax.erf(h * _INV_SQRT2))
    h = (h - mean) * jax.lax.rsqrt(var + _BN_EPS) * gamma + beta
    return h @ w2 + b2


if __name__ == "__main__":
    # Small shapes consistent with MLPRegressor(input_shape=32, output_shape=16, hidden_size=256)
    D_IN, HIDDEN, D_OUT = 32, 256, 16

    key = jax.random.PRNGKey(0)
    kx, kp, kx2 = jax.random.split(key, 3)
    params = init_params(kp, D_IN, HIDDEN, D_OUT)

    # Case 1: tiny batch (single-tile path)
    B = 8
    x = jax.random.normal(kx, (B, D_IN), jnp.float32)
    out = jax.block_until_ready(mlp_regressor_forward(x, params))
    ref = _reference_forward(x, params)
    assert out.shape == (B, D_OUT)
    # Tolerance relaxed vs pure-f32 because fc1 inputs are bf16 on the MXU.
    assert jnp.allclose(out, ref, atol=2e-2, rtol=2e-2), "mismatch vs reference (B=8)"

    # Case 2: multi-tile path (>=2 grid steps, ragged batch padding)
    B2 = 100
    x2 = jax.random.normal(kx2, (B2, D_IN), jnp.float32)
    out2 = jax.block_until_ready(mlp_regressor_forward(x2, params))
    ref2 = _reference_forward(x2, params)
    assert out2.shape == (B2, D_OUT)
    assert jnp.allclose(out2, ref2, atol=2e-2, rtol=2e-2), "mismatch vs reference (B=100)"

    print("KERNEL_OK")
</pallas_src>

<mosaic_0001>
module attributes {stable_mosaic.version = 11 : i64} {
  func.func @_mlp_regressor_kernel(%arg0: i32, %arg1: memref<8x32xbf16, #tpu.memory_space<vmem>>, %arg2: memref<32x256xbf16, #tpu.memory_space<vmem>>, %arg3: memref<1x256xf32, #tpu.memory_space<vmem>>, %arg4: memref<256x128xf32, #tpu.memory_space<vmem>>, %arg5: memref<1x128xf32, #tpu.memory_space<vmem>>, %arg6: memref<8x128xf32, #tpu.memory_space<vmem>>) attributes {dimension_semantics = [#tpu.dimension_semantics<parallel>], iteration_bounds = array<i64: 1>, scalar_prefetch = 0 : i64, scratch_operands = 0 : i64, tpu.core_type = #tpu.core_type<tc>, window_params = [{transform_indices = @transform_0, window_bounds = array<i64: 8, 32>}, {pipeline_mode = #tpu.pipeline_mode<synchronous>, transform_indices = @transform_1, window_bounds = array<i64: 32, 256>}, {pipeline_mode = #tpu.pipeline_mode<synchronous>, transform_indices = @transform_2, window_bounds = array<i64: 1, 256>}, {pipeline_mode = #tpu.pipeline_mode<synchronous>, transform_indices = @transform_3, window_bounds = array<i64: 256, 128>}, {pipeline_mode = #tpu.pipeline_mode<synchronous>, transform_indices = @transform_4, window_bounds = array<i64: 1, 128>}, {transform_indices = @transform_5, window_bounds = array<i64: 8, 128>}]} {
    %c0 = arith.constant 0 : index
    %c0_0 = arith.constant 0 : index
    %0 = vector.load %arg1[%c0, %c0_0] : memref<8x32xbf16, #tpu.memory_space<vmem>>, vector<8x32xbf16>
    %c0_1 = arith.constant 0 : index
    %c0_2 = arith.constant 0 : index
    %1 = vector.load %arg2[%c0_1, %c0_2] : memref<32x256xbf16, #tpu.memory_space<vmem>>, vector<32x256xbf16>
    %c0_3 = arith.constant 0 : index
    %c0_4 = arith.constant 0 : index
    %2 = vector.load %arg4[%c0_3, %c0_4] : memref<256x128xf32, #tpu.memory_space<vmem>>, vector<256x128xf32>
    %cst = arith.constant dense<0.000000e+00> : vector<8x256xf32>
    %3 = tpu.matmul %0, %1, %cst {dimension_numbers = #tpu.dot_dimension_numbers<[1], [0], [0], [1], [0, 0, 1, 1], [], []>} : vector<8x32xbf16>, vector<32x256xbf16>, vector<8x256xf32> -> vector<8x256xf32>
    %c0_5 = arith.constant 0 : index
    %c0_6 = arith.constant 0 : index
    %4 = vector.load %arg3[%c0_5, %c0_6] : memref<1x256xf32, #tpu.memory_space<vmem>>, vector<1x256xf32>
    %5 = vector.broadcast %4 : vector<1x256xf32> to vector<8x256xf32>
    %6 = arith.addf %3, %5 : vector<8x256xf32>
    %cst_7 = arith.constant 5.000000e-01 : f32
    %7 = vector.broadcast %cst_7 : f32 to vector<8x256xf32>
    %8 = arith.mulf %7, %6 : vector<8x256xf32>
    %cst_8 = arith.constant 0.707106769 : f32
    %9 = vector.broadcast %cst_8 : f32 to vector<8x256xf32>
    %10 = arith.mulf %6, %9 : vector<8x256xf32>
    %11 = math.erf %10 : vector<8x256xf32>
    %cst_9 = arith.constant 1.000000e+00 : f32
    %12 = vector.broadcast %cst_9 : f32 to vector<8x256xf32>
    %13 = arith.addf %12, %11 : vector<8x256xf32>
    %14 = arith.mulf %8, %13 : vector<8x256xf32>
    %cst_10 = arith.constant dense<0.000000e+00> : vector<8x128xf32>
    %15 = tpu.matmul %14, %2, %cst_10 {dimension_numbers = #tpu.dot_dimension_numbers<[1], [0], [0], [1], [0, 0, 1, 1], [], []>} : vector<8x256xf32>, vector<256x128xf32>, vector<8x128xf32> -> vector<8x128xf32>
    %c0_11 = arith.constant 0 : index
    %c0_12 = arith.constant 0 : index
    %16 = vector.load %arg5[%c0_11, %c0_12] : memref<1x128xf32, #tpu.memory_space<vmem>>, vector<1x128xf32>
    %17 = vector.broadcast %16 : vector<1x128xf32> to vector<8x128xf32>
    %18 = arith.addf %15, %17 : vector<8x128xf32>
    %c0_13 = arith.constant 0 : index
    %c0_14 = arith.constant 0 : index
    %19 = vector.load %arg6[%c0_13, %c0_14] : memref<8x128xf32, #tpu.memory_space<vmem>>, vector<8x128xf32>
    tpu.vector_store %arg6[%c0_13, %c0_14], %18 {strides = array<i32>} : memref<8x128xf32, #tpu.memory_space<vmem>>, vector<8x128xf32>,
    return
  }
  func.func @transform_0(%arg0: i32) -> (i32, i32) {
    %c0_i32 = arith.constant 0 : i32
    %c0_i32_0 = arith.constant 0 : i32
    return %arg0, %c0_i32 : i32, i32
  }
  func.func @transform_1(%arg0: i32) -> (i32, i32) {
    %c0_i32 = arith.constant 0 : i32
    %c0_i32_0 = arith.constant 0 : i32
    %c0_i32_1 = arith.constant 0 : i32
    return %c0_i32, %c0_i32_0 : i32, i32
  }
  func.func @transform_2(%arg0: i32) -> (i32, i32) {
    %c0_i32 = arith.constant 0 : i32
    %c0_i32_0 = arith.constant 0 : i32
    %c0_i32_1 = arith.constant 0 : i32
    return %c0_i32, %c0_i32_0 : i32, i32
  }
  func.func @transform_3(%arg0: i32) -> (i32, i32) {
    %c0_i32 = arith.constant 0 : i32
    %c0_i32_0 = arith.constant 0 : i32
    %c0_i32_1 = arith.constant 0 : i32
    return %c0_i32, %c0_i32_0 : i32, i32
  }
  func.func @transform_4(%arg0: i32) -> (i32, i32) {
    %c0_i32 = arith.constant 0 : i32
    %c0_i32_0 = arith.constant 0 : i32
    %c0_i32_1 = arith.constant 0 : i32
    return %c0_i32, %c0_i32_0 : i32, i32
  }
  func.func @transform_5(%arg0: i32) -> (i32, i32) {
    %c0_i32 = arith.constant 0 : i32
    %c0_i32_0 = arith.constant 0 : i32
    return %arg0, %c0_i32 : i32, i32
  }
}

</mosaic_0001>

<llo_original>
// kernel: tpu_custom_call.1
$region0: #{tpu_custom_call.1}
  #allocation0 [shape = 'u32[]', space=smem, size = 0x4, offset = 0x4, fixed_abs, tag = 'smem constant byte address 0x4 - core index']
  #allocation1 [shape = 'u32[144,128]{1,0:T(1,128)}', space=vmem, size = 0x12000, scoped, tag = 'internal scratch']
  %s0 = inlined_call_operand.hbm [shape: bf16[8,32], index: 0, kind: input, shape index: {}]
  %s1 = inlined_call_operand.hbm [shape: bf16[32,256], index: 1, kind: input, shape index: {}]
  %s2 = inlined_call_operand.vmem [shape: f32[1,256], index: 2, kind: input, shape index: {}]
  %s3 = inlined_call_operand.hbm [shape: f32[256,128], index: 3, kind: input, shape index: {}]
  %s4 = inlined_call_operand.vmem [shape: f32[1,128], index: 4, kind: input, shape index: {}]
  %s5 = inlined_call_operand.hbm [shape: f32[8,128], index: 5, kind: output, shape index: {}]
  %s6 = sld [smem:[#allocation0]]
  $region42: #{tpu_custom_call.1} parent=0
    _
  %s8 = ssub.s32 1, %s6
  %s9 = scalar_select 0, %s8, %s6
  $region1: #{tpu_custom_call.1} parent=0
    #allocation2 [shape = 'u8[2048]{0}', space=vmem, size = 0x800, scoped, tag = 'input window, operand 0, single buffered']
    #allocation3 [shape = 's32[1]{0}', space=sflag, size = 0x4, scoped, tag = 'scoped memory for tpu_custom_call.1']
    #allocation4 [shape = 's32[1]{0}', space=sflag, size = 0x4, scoped, tag = 'scoped memory for tpu_custom_call.1']
    #allocation5 [shape = 'u8[16384]{0}', space=vmem, size = 0x4000, scoped, tag = 'input window, operand 1, single buffered']
    #allocation6 [shape = 's32[1]{0}', space=sflag, size = 0x4, scoped, tag = 'scoped memory for tpu_custom_call.1']
    #allocation7 [shape = 'u8[131072]{0}', space=vmem, size = 0x20000, scoped, tag = 'input window, operand 3, single buffered']
    #allocation8 [shape = 'u8[4096]{0}', space=vmem, size = 0x1000, scoped, tag = 'output window, operand 0, single buffered']
    %10 = vsyncpa [#allocation3], 0
    %11 = vsyncpa [#allocation6], 0
    %12 = vsyncpa [#allocation4], 0
    // Predicated region
    $region2: #{tpu_custom_call.1} parent=1 // pred_check
      _
    $region3: #{tpu_custom_call.1} parent=1 // pred_check_branch
      %14 = sbr.rel (0) target = $region5
    $region4: #{tpu_custom_call.1} parent=1 // pred_region
      %s16 = ssub.s32 64, 64
      %17 = vsyncadd [#allocation3], %s16
      %s19 = sshll.u32 [#allocation2], 4
      %s20 = int_to_ptr.vmem [resolvable:$true] %s19
      %22 = dma.hbm_to_vmem [thread:$0]  %s0, 64, %s20, [#allocation3]
    $region5: #{tpu_custom_call.1} parent=1 // pred_fallthru
      _
    // Predicated region
    $region6: #{tpu_custom_call.1} parent=1 // pred_check
      _
    $region7: #{tpu_custom_call.1} parent=1 // pred_check_branch
      %24 = sbr.rel (0) target = $region9
    $region8: #{tpu_custom_call.1} parent=1 // pred_region
      %s26 = ssub.s32 512, 512
      %27 = vsyncadd [#allocation6], %s26
      %s28 = sshll.u32 [#allocation5], 4
      %s29 = int_to_ptr.vmem [resolvable:$true] %s28
      %34 = dma.hbm_to_vmem [thread:$0]  %s1, 512, %s29, [#allocation6], 128, 128, 8
    $region9: #{tpu_custom_call.1} parent=1 // pred_fallthru
      _
    // Predicated region
    $region10: #{tpu_custom_call.1} parent=1 // pred_check
      _
    $region11: #{tpu_custom_call.1} parent=1 // pred_check_branch
      %36 = sbr.rel (0) target = $region13
    $region12: #{tpu_custom_call.1} parent=1 // pred_region
      _
    $region13: #{tpu_custom_call.1} parent=1 // pred_fallthru
      _
    // Predicated region
    $region14: #{tpu_custom_call.1} parent=1 // pred_check
      _
    $region15: #{tpu_custom_call.1} parent=1 // pred_check_branch
      %38 = sbr.rel (0) target = $region17
    $region16: #{tpu_custom_call.1} parent=1 // pred_region
      %s40 = ssub.s32 4096, 4096
      %41 = vsyncadd [#allocation6], %s40
      %s42 = sshll.u32 [#allocation7], 4
      %s43 = int_to_ptr.vmem [resolvable:$true] %s42
      %48 = dma.hbm_to_vmem [thread:$0]  %s3, 4096, %s43, [#allocation6], 128, 128, 8
    $region17: #{tpu_custom_call.1} parent=1 // pred_fallthru
      _
    // Predicated region
    $region18: #{tpu_custom_call.1} parent=1 // pred_check
      _
    $region19: #{tpu_custom_call.1} parent=1 // pred_check_branch
      %50 = sbr.rel (0) target = $region21
    $region20: #{tpu_custom_call.1} parent=1 // pred_region
      _
    $region21: #{tpu_custom_call.1} parent=1 // pred_fallthru
      _
    // Predicated region
    $region22: #{tpu_custom_call.1} parent=1 // pred_check
      _
    $region23: #{tpu_custom_call.1} parent=1 // pred_check_branch
      %52 = sbr.rel (0) target = $region25
    $region24: #{tpu_custom_call.1} parent=1 // pred_region
      %53 = dma.done [#allocation3], 64
    $region25: #{tpu_custom_call.1} parent=1 // pred_fallthru
      _
    // Predicated region
    $region26: #{tpu_custom_call.1} parent=1 // pred_check
      _
    $region27: #{tpu_custom_call.1} parent=1 // pred_check_branch
      %55 = sbr.rel (0) target = $region29
    $region28: #{tpu_custom_call.1} parent=1 // pred_region
      %56 = dma.done [#allocation6], 512
    $region29: #{tpu_custom_call.1} parent=1 // pred_fallthru
      _
    // Predicated region
    $region30: #{tpu_custom_call.1} parent=1 // pred_check
      _
    $region31: #{tpu_custom_call.1} parent=1 // pred_check_branch
      %58 = sbr.rel (0) target = $region33
    $region32: #{tpu_custom_call.1} parent=1 // pred_region
      %59 = dma.done [#allocation6], 4096
    $region33: #{tpu_custom_call.1} parent=1 // pred_fallthru
      _
    %v61 = vld [vmem:[#allocation2] sm:$0xf]
    %v62 = vld [vmem:[#allocation5] sm:$0xff]
    %v63 = vld [vmem:[#allocation5 + $0x8] sm:$0xff]
    %v64 = vld [vmem:[#allocation5 + $0x10] sm:$0xff]
    %v65 = vld [vmem:[#allocation5 + $0x18] sm:$0xff]
    %v66 = vld [vmem:[#allocation7] sm:$0xff]
    %v67 = vld [vmem:[#allocation7 + $0x8] sm:$0xff]
    %v68 = vld [vmem:[#allocation7 + $0x10] sm:$0xff]
    %v69 = vld [vmem:[#allocation7 + $0x18] sm:$0xff]
    %v70 = vld [vmem:[#allocation7 + $0x20] sm:$0xff]
    %v71 = vld [vmem:[#allocation7 + $0x28] sm:$0xff]
    %v72 = vld [vmem:[#allocation7 + $0x30] sm:$0xff]
    %v73 = vld [vmem:[#allocation7 + $0x38] sm:$0xff]
    %v74 = vld [vmem:[#allocation7 + $0x40] sm:$0xff]
    %v75 = vld [vmem:[#allocation7 + $0x48] sm:$0xff]
    %v76 = vld [vmem:[#allocation7 + $0x50] sm:$0xff]
    %v77 = vld [vmem:[#allocation7 + $0x58] sm:$0xff]
    %v78 = vld [vmem:[#allocation7 + $0x60] sm:$0xff]
    %v79 = vld [vmem:[#allocation7 + $0x68] sm:$0xff]
    %v80 = vld [vmem:[#allocation7 + $0x70] sm:$0xff]
    %v81 = vld [vmem:[#allocation7 + $0x78] sm:$0xff]
    %v82 = vld [vmem:[#allocation7 + $0x80] sm:$0xff]
    %v83 = vld [vmem:[#allocation7 + $0x88] sm:$0xff]
    %v84 = vld [vmem:[#allocation7 + $0x90] sm:$0xff]
    %v85 = vld [vmem:[#allocation7 + $0x98] sm:$0xff]
    %v86 = vld [vmem:[#allocation7 + $0xa0] sm:$0xff]
    %v87 = vld [vmem:[#allocation7 + $0xa8] sm:$0xff]
    %v88 = vld [vmem:[#allocation7 + $0xb0] sm:$0xff]
    %v89 = vld [vmem:[#allocation7 + $0xb8] sm:$0xff]
    %v90 = vld [vmem:[#allocation7 + $0xc0] sm:$0xff]
    %v91 = vld [vmem:[#allocation7 + $0xc8] sm:$0xff]
    %v92 = vld [vmem:[#allocation7 + $0xd0] sm:$0xff]
    %v93 = vld [vmem:[#allocation7 + $0xd8] sm:$0xff]
    %v94 = vld [vmem:[#allocation7 + $0xe0] sm:$0xff]
    %v95 = vld [vmem:[#allocation7 + $0xe8] sm:$0xff]
    %v96 = vld [vmem:[#allocation7 + $0xf0] sm:$0xff]
    %v97 = vld [vmem:[#allocation7 + $0xf8] sm:$0xff]
    %v98 = vld [vmem:[%s2] sm:$0x3]
    %v100 = vlaneseq
    %v101 = vshrl.u32 %v100, 7
    %v102 = vsub.s32 0, %v101
    %v103 = vrot.slane %v98, %v102
    %v104 = vlaneseq
    %v105 = vshrl.u32 %v104, 7
    %v106 = vsub.s32 1, %v105
    %v107 = vrot.slane %v98, %v106
    %v114 = vunpack.c.l.b16 %v62
    %v115 = vunpack.c.h.b16 %v62
    %v116 = vunpack.c.l.b16 %v63
    %v117 = vunpack.c.h.b16 %v63
    %v118 = vunpack.c.l.b16 %v64
    %v119 = vunpack.c.h.b16 %v64
    %v120 = vunpack.c.l.b16 %v65
    %v121 = vunpack.c.h.b16 %v65
    %v122 = vpack.c.b16 %v116, %v114
    %v123 = vpack.c.b16 %v117, %v115
    %v124 = vpack.c.b16 %v120, %v118
    %v125 = vpack.c.b16 %v121, %v119
    %vm130 = vcmask 261120
    %v132 = vsel %vm130, %v61, 0
    %134 = vmatprep.subr.bf16.mxu0 %v123
    %135 = vmatpush1.bf16.msra.mxu0 %v122
    %136 = vmatprep.subr.bf16.mxu0 %v125
    %137 = vmatpush1.bf16.msra.mxu0 %v124
    %138 = vmatprep.subr.bf16.mxu0 0
    %139 = vmatpush1.bf16.msra.mxu0 0
    %140 = vmatprep.subr.bf16.mxu0 0
    %141 = vmatpush1.bf16.msra.mxu0 0
    %142 = vmatprep.subr.bf16.mxu0 0
    %143 = vmatpush1.bf16.msra.mxu0 0
    %144 = vmatprep.subr.bf16.mxu0 0
    %145 = vmatpush1.bf16.msra.mxu0 0
    %146 = vmatprep.subr.bf16.mxu0 0
    %147 = vmatpush1.bf16.msra.mxu0 0
    %148 = vmatprep.subr.bf16.mxu0 0
    %149 = vmatpush1.bf16.msra.mxu0 0
    %150 = vmatprep.subr.bf16.mxu0 0
    %151 = vmatpush1.bf16.msra.mxu0 0
    %152 = vmatprep.subr.bf16.mxu0 0
    %153 = vmatpush1.bf16.msra.mxu0 0
    %154 = vmatprep.subr.bf16.mxu0 0
    %155 = vmatpush1.bf16.msra.mxu0 0
    %156 = vmatprep.subr.bf16.mxu0 0
    %157 = vmatpush1.bf16.msra.mxu0 0
    %158 = vmatprep.subr.bf16.mxu0 0
    %159 = vmatpush1.bf16.msra.mxu0 0
    %160 = vmatprep.subr.bf16.mxu0 0
    %161 = vmatpush1.bf16.msra.mxu0 0
    %162 = vmatprep.subr.bf16.mxu0 0
    %163 = vmatpush1.bf16.msra.mxu0 0
    %164 = vmatprep.subr.bf16.mxu0 0
    %165 = vmatpush1.bf16.msra.mxu0 0
    %166 = vmatprep.mubr.bf16.mxu0 0
    %167 = vmatmul.mubr.bf16.gmra.mrb[0].mxu0 %v132
    %v168 = vpop.f32.mrb[0].mxu0
    %v169 = vadd.f32 %v103, %v168
    %v170 = vpop.f32.mrb[0].mxu0
    %v171 = vadd.f32 %v107, %v170
    %v172 = vpop.f32.mrb[0].mxu0
    %v173 = vpop.f32.mrb[0].mxu0
    %174 = vdwg.mxu0
    %v175 = vmul.f32 %v169, 0.5
    %v176 = vmul.f32 %v171, 0.5
    %v177 = vmul.f32 %v169, 0.70710677
    %v178 = vmul.f32 %v171, 0.70710677
    %v179 = verf.f32.pop %v177
    %v180 = verf.f32.pop %v178
    %v181 = vadd.f32 %v179, 1.0
    %v182 = vadd.f32 %v180, 1.0
    %v183 = vmul.f32 %v175, %v181
    %v184 = vmul.f32 %v176, %v182
    %v185 = vld [vmem:[%s4] sm:$0x1]
    %v187 = vlaneseq
    %v188 = vshrl.u32 %v187, 7
    %v189 = vsub.s32 0, %v188
    %v190 = vrot.slane %v185, %v189
    %192 = vmatprep.subr.mxu0 0.0
    %193 = vmatpush1.msra.mxu0 %v66
    %194 = vmatprep.subr.mxu0 0.0
    %195 = vmatpush1.msra.mxu0 %v67
    %196 = vmatprep.subr.mxu0 0.0
    %197 = vmatpush1.msra.mxu0 %v68
    %198 = vmatprep.subr.mxu0 0.0
    %199 = vmatpush1.msra.mxu0 %v69
    %200 = vmatprep.subr.mxu0 0.0
    %201 = vmatpush1.msra.mxu0 %v70
    %202 = vmatprep.subr.mxu0 0.0
    %203 = vmatpush1.msra.mxu0 %v71
    %204 = vmatprep.subr.mxu0 0.0
    %205 = vmatpush1.msra.mxu0 %v72
    %206 = vmatprep.subr.mxu0 0.0
    %207 = vmatpush1.msra.mxu0 %v73
    %208 = vmatprep.subr.mxu0 0.0
    %209 = vmatpush1.msra.mxu0 %v74
    %210 = vmatprep.subr.mxu0 0.0
    %211 = vmatpush1.msra.mxu0 %v75
    %212 = vmatprep.subr.mxu0 0.0
    %213 = vmatpush1.msra.mxu0 %v76
    %214 = vmatprep.subr.mxu0 0.0
    %215 = vmatpush1.msra.mxu0 %v77
    %216 = vmatprep.subr.mxu0 0.0
    %217 = vmatpush1.msra.mxu0 %v78
    %218 = vmatprep.subr.mxu0 0.0
    %219 = vmatpush1.msra.mxu0 %v79
    %220 = vmatprep.subr.mxu0 0.0
    %221 = vmatpush1.msra.mxu0 %v80
    %222 = vmatprep.subr.mxu0 0.0
    %223 = vmatpush1.msra.mxu0 %v81
    %224 = vmatprep.subr.mxu0 0.0
    %225 = vmatpush1.msra.mxu0 %v82
    %226 = vmatprep.subr.mxu0 0.0
    %227 = vmatpush1.msra.mxu0 %v83
    %228 = vmatprep.subr.mxu0 0.0
    %229 = vmatpush1.msra.mxu0 %v84
    %230 = vmatprep.subr.mxu0 0.0
    %231 = vmatpush1.msra.mxu0 %v85
    %232 = vmatprep.subr.mxu0 0.0
    %233 = vmatpush1.msra.mxu0 %v86
    %234 = vmatprep.subr.mxu0 0.0
    %235 = vmatpush1.msra.mxu0 %v87
    %236 = vmatprep.subr.mxu0 0.0
    %237 = vmatpush1.msra.mxu0 %v88
    %238 = vmatprep.subr.mxu0 0.0
    %239 = vmatpush1.msra.mxu0 %v89
    %240 = vmatprep.subr.mxu0 0.0
    %241 = vmatpush1.msra.mxu0 %v90
    %242 = vmatprep.subr.mxu0 0.0
    %243 = vmatpush1.msra.mxu0 %v91
    %244 = vmatprep.subr.mxu0 0.0
    %245 = vmatpush1.msra.mxu0 %v92
    %246 = vmatprep.subr.mxu0 0.0
    %247 = vmatpush1.msra.mxu0 %v93
    %248 = vmatprep.subr.mxu0 0.0
    %249 = vmatpush1.msra.mxu0 %v94
    %250 = vmatprep.subr.mxu0 0.0
    %251 = vmatpush1.msra.mxu0 %v95
    %252 = vmatprep.subr.mxu0 0.0
    %253 = vmatpush1.msra.mxu0 %v96
    %254 = vmatprep.subr.mxu0 0.0
    %255 = vmatpush1.msra.mxu0 %v97
    %256 = vmatprep.mubr.f32.mxu0 %v184
    %257 = vmatmul.mubr.f32.gmra.mrb[0].mxu0 %v183
    %v258 = vpop.f32.mrb[0].mxu0
    %v259 = vadd.f32 %v190, %v258
    %v260 = vpop.f32.mrb[0].mxu0
    %261 = vdwg.mxu0
    %262 = vst [vmem:[#allocation8] sm:$0xff] %v259
    // Predicated region
    $region34: #{tpu_custom_call.1} parent=1 // pred_check
      _
    $region35: #{tpu_custom_call.1} parent=1 // pred_check_branch
      %264 = sbr.rel (0) target = $region37
    $region36: #{tpu_custom_call.1} parent=1 // pred_region
      %s266 = ssub.s32 128, 128
      %267 = vsyncadd [#allocation4], %s266
      %s269 = sshll.u32 [#allocation8], 4
      %s270 = int_to_ptr.vmem [resolvable:$true] %s269
      %272 = dma.vmem_to_hbm [thread:$0]  %s270, 128, %s5, [#allocation4]
    $region37: #{tpu_custom_call.1} parent=1 // pred_fallthru
      _
    // Predicated region
    $region38: #{tpu_custom_call.1} parent=1 // pred_check
      _
    $region39: #{tpu_custom_call.1} parent=1 // pred_check_branch
      %274 = sbr.rel (0) target = $region41
    $region40: #{tpu_custom_call.1} parent=1 // pred_region
      %275 = dma.done [#allocation4], 128
    $region41: #{tpu_custom_call.1} parent=1 // pred_fallthru
      _
    %276 = vsyncpa [#allocation3], 1
    %277 = vsyncpa [#allocation6], 1
    %278 = vsyncpa [#allocation4], 1

</llo_original>
